<compile_context>
chip_gen: v5e
topology: v5e:2x2
jax: 0.10.0
libtpu: 0.0.40
codegen_flags: <defaults>
</compile_context>

<pallas_src>
import jax
import jax.numpy as jnp
from jax.experimental import pallas as pl
from jax.experimental.pallas import tpu as pltpu


def _make_kernel(n_lin):
    def kernel(params_ref, x_ref, *refs):
        # refs = (w_0..w_{n-1}, b_0..b_{n-1}, out); weights are (out, in),
        # biases are (out, 1), activations are (features, batch).
        w_refs = refs[:n_lin]
        b_refs = refs[n_lin:2 * n_lin]
        o_ref = refs[2 * n_lin]

        # Scalars (precomputed in the wrapper), read once up front from SMEM.
        beta_r = params_ref[0]        # relu(beta)
        oma = params_ref[1]           # 1 - alpha
        gamma = params_ref[2]

        x = x_ref[...]                                            # (1, tn) f32

        # ---- CustomPreprocessing, fused into ONE exp ----
        # gamma * (1-xc)**relu(beta) * xc**(1-alpha)
        #   == gamma * exp(relu(beta)*log(1-xc) + (1-alpha)*log(xc))
        # (valid because xc is clipped to [1e-6, 1-1e-6] before both logs)
        xc = jnp.clip(x, 1e-06, 1.0 - 1e-06)
        f_pre = gamma * jnp.exp(beta_r * jnp.log(1.0 - xc)
                                + oma * jnp.log(xc))              # (1, tn)

        # ---- Layer 0 (Linear 1->2): pure broadcast FMA, no MXU ----
        h = jnp.tanh(w_refs[0][...] * x + b_refs[0][...])         # (2, tn)

        # ---- Layer 1 (Linear 2->nodes): two broadcast FMAs ----
        w1 = w_refs[1][...]                                       # (nodes, 2)
        h = jnp.tanh(w1[:, 0:1] * h[0:1, :]
                     + w1[:, 1:2] * h[1:2, :]
                     + b_refs[1][...])                            # (nodes, tn)

        # ---- Remaining layers (nodes->nodes, nodes->2) on the MXU ----
        for w_ref, b_ref in zip(w_refs[2:], b_refs[2:]):
            h = jnp.tanh(
                jnp.dot(w_ref[...], h, preferred_element_type=jnp.float32)
                + b_ref[...]
            )

        # ---- f_nu = f_preproc * f_NN  (broadcast (1,tn) * (out_dim,tn)) ----
        o_ref[...] = (f_pre * h).astype(o_ref.dtype)

    return kernel


def _round_up(a, m):
    return ((a + m - 1) // m) * m


def preprocessed_mlp(x, alpha_beta_gamma, weights, biases, *,
                     tn=None, lane_major_output=False):
    """x: (N, 1) f32.  weights[i]: (in_i, out_i).  biases[i]: (1, out_i).

    Returns (N, out_dim) f32 (PyTorch forward() semantics), or (out_dim, N)
    lane-major if lane_major_output=True (skips the wrapper transpose pass).
    """
    N = x.shape[0]
    n_lin = len(weights)
    assert n_lin >= 2, "SimplePerceptron has at least two Linear layers"
    out_dim = weights[-1].shape[1]

    LANE = 128
    CAP = 16384            # lanes per tile; v7x-safe (temps << 32 MiB VMEM)

    if tn is None:
        Np0 = _round_up(N, LANE)
        if Np0 > CAP:
            steps = -(-Np0 // CAP)          # ceil: big batches -> many tiles
        elif Np0 >= 2 * LANE:
            steps = 2                       # keep both v7x TensorCores busy
        else:
            steps = 1                       # tiny batch: one 128-lane tile
        tn = _round_up(-(-Np0 // steps), LANE)
        Np = steps * tn
    else:
        assert tn % LANE == 0, "tile must be 128-lane aligned"
        Np = _round_up(N, tn)
    grid = (Np // tn,)

    # --- wrapper-side layout plumbing -------------------------------------
    # batch -> lane axis, pad to Np lanes (pad value is harmless: it is clipped
    # inside the kernel and sliced off below).
    x_flat = x.reshape(N).astype(jnp.float32)
    if Np != N:
        x_flat = jnp.pad(x_flat, (0, Np - N), constant_values=0.5)
    x_t = x_flat.reshape(1, Np)

    abg = jnp.asarray(alpha_beta_gamma, jnp.float32)
    # precompute relu(beta), (1 - alpha); gamma kept as a multiply (gamma may
    # be <= 0 in general, so we do not fold log(gamma) into the exp argument).
    params = jnp.stack([jnp.maximum(abg[1], 0.0), 1.0 - abg[0], abg[2]])

    w_t = [jnp.asarray(w, jnp.float32).T for w in weights]        # (out_i, in_i)
    b_t = [jnp.asarray(b, jnp.float32).reshape(-1, 1) for b in biases]  # (out_i, 1)

    in_specs = [
        pl.BlockSpec(memory_space=pltpu.MemorySpace.SMEM),        # scalar params
        pl.BlockSpec((1, tn), lambda i: (0, i)),                  # x tile (lane-dense)
    ]
    for w in w_t:
        in_specs.append(pl.BlockSpec(w.shape, lambda i: (0, 0)))  # full weight
    for b in b_t:
        in_specs.append(pl.BlockSpec(b.shape, lambda i: (0, 0)))  # full bias

    out_spec = pl.BlockSpec((out_dim, tn), lambda i: (0, i))      # lane-dense output

    out_t = pl.pallas_call(
        _make_kernel(n_lin),
        out_shape=jax.ShapeDtypeStruct((out_dim, Np), jnp.float32),
        grid_spec=pltpu.PrefetchScalarGridSpec(
            num_scalar_prefetch=0,
            grid=grid,
            in_specs=in_specs,
            out_specs=out_spec,
        ),
        compiler_params=pltpu.CompilerParams(
            dimension_semantics=("parallel",),
            vmem_limit_bytes=48 * 1024 * 1024,
        ),
    )(params, x_t, *w_t, *b_t)

    if lane_major_output:
        return out_t[:, :N]                                       # (out_dim, N)
    return out_t[:, :N].T                                         # (N, out_dim)


def _reference(x, abg, weights, biases):
    alpha, beta, gamma = abg[0], abg[1], abg[2]
    xc = jnp.clip(x, 1e-06, 1.0 - 1e-06)
    beta_r = jnp.maximum(beta, 0.0)
    f_pre = gamma * (1.0 - xc) ** beta_r * xc ** (1.0 - alpha)
    h = x
    for w, b in zip(weights, biases):
        h = jnp.tanh(h @ w + b)
    return f_pre * h


if __name__ == "__main__":
    # Module hyper-params: num_nodes=32, num_layers=4, preproc=True, acts=Tanh.
    num_nodes = 32
    num_layers = 4

    key = jax.random.PRNGKey(0)
    k_x, k_w = jax.random.split(key)

    # alpha, beta, gamma (nn.Parameter scalars)
    abg = jnp.array([1.2, 0.7, 0.9], dtype=jnp.float32)

    # Linear layer shapes: 1->2, 2->nodes, (num_layers-2)x nodes->nodes, nodes->2
    dims = [1, 2, num_nodes] + [num_nodes] * (num_layers - 2) + [2]
    weights, biases = [], []
    for li in range(len(dims) - 1):
        k_w, kw, kb = jax.random.split(k_w, 3)
        scale = 1.0 / (dims[li] ** 0.5)
        weights.append(jax.random.uniform(kw, (dims[li], dims[li + 1]),
                                          jnp.float32, -scale, scale))
        biases.append(jax.random.uniform(kb, (1, dims[li + 1]),
                                         jnp.float32, -scale, scale))

    # Test 1: small batch (exercises the 128-lane padding + single-tile path).
    # Test 2: non-aligned larger batch (exercises the multi-tile parallel grid).
    for N in (64, 1000):
        k_x, kx = jax.random.split(k_x)
        x = jax.random.uniform(kx, (N, 1), dtype=jnp.float32,
                               minval=1e-3, maxval=1.0 - 1e-3)
        out = preprocessed_mlp(x, abg, weights, biases)
        out = jax.block_until_ready(out)

        ref = _reference(x, abg, weights, biases)
        assert out.shape == (N, 2), (out.shape, N)
        assert jnp.allclose(out, ref, atol=1e-5, rtol=1e-5), \
            f"mismatch vs reference at N={N}"

    print("KERNEL_OK")
</pallas_src>

<mosaic_0001>
module attributes {stable_mosaic.version = 11 : i64} {
  func.func @kernel(%arg0: i32, %arg1: memref<3xf32, #tpu.memory_space<smem>>, %arg2: memref<1x128xf32, #tpu.memory_space<vmem>>, %arg3: memref<2x1xf32, #tpu.memory_space<vmem>>, %arg4: memref<32x2xf32, #tpu.memory_space<vmem>>, %arg5: memref<32x32xf32, #tpu.memory_space<vmem>>, %arg6: memref<32x32xf32, #tpu.memory_space<vmem>>, %arg7: memref<2x32xf32, #tpu.memory_space<vmem>>, %arg8: memref<2x1xf32, #tpu.memory_space<vmem>>, %arg9: memref<32x1xf32, #tpu.memory_space<vmem>>, %arg10: memref<32x1xf32, #tpu.memory_space<vmem>>, %arg11: memref<32x1xf32, #tpu.memory_space<vmem>>, %arg12: memref<2x1xf32, #tpu.memory_space<vmem>>, %arg13: memref<2x128xf32, #tpu.memory_space<vmem>>) attributes {dimension_semantics = [#tpu.dimension_semantics<parallel>], iteration_bounds = array<i64: 1>, scalar_prefetch = 0 : i64, scratch_operands = 0 : i64, tpu.core_type = #tpu.core_type<tc>, window_params = [{transform_indices = @transform_0, window_bounds = array<i64: 3>}, {transform_indices = @transform_1, window_bounds = array<i64: 1, 128>}, {pipeline_mode = #tpu.pipeline_mode<synchronous>, transform_indices = @transform_2, window_bounds = array<i64: 2, 1>}, {pipeline_mode = #tpu.pipeline_mode<synchronous>, transform_indices = @transform_3, window_bounds = array<i64: 32, 2>}, {pipeline_mode = #tpu.pipeline_mode<synchronous>, transform_indices = @transform_4, window_bounds = array<i64: 32, 32>}, {pipeline_mode = #tpu.pipeline_mode<synchronous>, transform_indices = @transform_5, window_bounds = array<i64: 32, 32>}, {pipeline_mode = #tpu.pipeline_mode<synchronous>, transform_indices = @transform_6, window_bounds = array<i64: 2, 32>}, {pipeline_mode = #tpu.pipeline_mode<synchronous>, transform_indices = @transform_7, window_bounds = array<i64: 2, 1>}, {pipeline_mode = #tpu.pipeline_mode<synchronous>, transform_indices = @transform_8, window_bounds = array<i64: 32, 1>}, {pipeline_mode = #tpu.pipeline_mode<synchronous>, transform_indices = @transform_9, window_bounds = array<i64: 32, 1>}, {pipeline_mode = #tpu.pipeline_mode<synchronous>, transform_indices = @transform_10, window_bounds = array<i64: 32, 1>}, {pipeline_mode = #tpu.pipeline_mode<synchronous>, transform_indices = @transform_11, window_bounds = array<i64: 2, 1>}, {transform_indices = @transform_12, window_bounds = array<i64: 2, 128>}]} {
    %c0 = arith.constant 0 : index
    %0 = memref.load %arg1[%c0] : memref<3xf32, #tpu.memory_space<smem>>
    %c1 = arith.constant 1 : index
    %1 = memref.load %arg1[%c1] : memref<3xf32, #tpu.memory_space<smem>>
    %c2 = arith.constant 2 : index
    %2 = memref.load %arg1[%c2] : memref<3xf32, #tpu.memory_space<smem>>
    %c0_0 = arith.constant 0 : index
    %c0_1 = arith.constant 0 : index
    %3 = vector.load %arg2[%c0_0, %c0_1] : memref<1x128xf32, #tpu.memory_space<vmem>>, vector<1x128xf32>
    %cst = arith.constant 9.99999997E-7 : f32
    %cst_2 = arith.constant 0.999998986 : f32
    %4 = vector.broadcast %cst : f32 to vector<1x128xf32>
    %5 = arith.maximumf %4, %3 : vector<1x128xf32>
    %6 = vector.broadcast %cst_2 : f32 to vector<1x128xf32>
    %7 = arith.minimumf %6, %5 : vector<1x128xf32>
    %cst_3 = arith.constant 1.000000e+00 : f32
    %8 = vector.broadcast %cst_3 : f32 to vector<1x128xf32>
    %9 = arith.subf %8, %7 : vector<1x128xf32>
    %10 = math.log %9 : vector<1x128xf32>
    %11 = vector.broadcast %0 : f32 to vector<1x128xf32>
    %12 = arith.mulf %11, %10 : vector<1x128xf32>
    %13 = math.log %7 : vector<1x128xf32>
    %14 = vector.broadcast %1 : f32 to vector<1x128xf32>
    %15 = arith.mulf %14, %13 : vector<1x128xf32>
    %16 = arith.addf %12, %15 : vector<1x128xf32>
    %17 = math.exp %16 : vector<1x128xf32>
    %18 = vector.broadcast %2 : f32 to vector<1x128xf32>
    %19 = arith.mulf %18, %17 : vector<1x128xf32>
    %c0_4 = arith.constant 0 : index
    %c0_5 = arith.constant 0 : index
    %20 = vector.load %arg3[%c0_4, %c0_5] : memref<2x1xf32, #tpu.memory_space<vmem>>, vector<2x1xf32>
    %21 = vector.broadcast %20 : vector<2x1xf32> to vector<2x128xf32>
    %22 = vector.broadcast %3 : vector<1x128xf32> to vector<2x128xf32>
    %23 = arith.mulf %21, %22 : vector<2x128xf32>
    %c0_6 = arith.constant 0 : index
    %c0_7 = arith.constant 0 : index
    %24 = vector.load %arg8[%c0_6, %c0_7] : memref<2x1xf32, #tpu.memory_space<vmem>>, vector<2x1xf32>
    %25 = vector.broadcast %24 : vector<2x1xf32> to vector<2x128xf32>
    %26 = arith.addf %23, %25 : vector<2x128xf32>
    %27 = math.tanh %26 : vector<2x128xf32>
    %c0_8 = arith.constant 0 : index
    %c0_9 = arith.constant 0 : index
    %28 = vector.load %arg4[%c0_8, %c0_9] : memref<32x2xf32, #tpu.memory_space<vmem>>, vector<32x2xf32>
    %29 = vector.extract_strided_slice %28 {offsets = [0, 0], sizes = [32, 1], strides = [1, 1]} : vector<32x2xf32> to vector<32x1xf32>
    %30 = vector.extract_strided_slice %27 {offsets = [0, 0], sizes = [1, 128], strides = [1, 1]} : vector<2x128xf32> to vector<1x128xf32>
    %31 = vector.broadcast %29 : vector<32x1xf32> to vector<32x128xf32>
    %32 = vector.broadcast %30 : vector<1x128xf32> to vector<32x128xf32>
    %33 = arith.mulf %31, %32 : vector<32x128xf32>
    %34 = vector.extract_strided_slice %28 {offsets = [0, 1], sizes = [32, 1], strides = [1, 1]} : vector<32x2xf32> to vector<32x1xf32>
    %35 = vector.extract_strided_slice %27 {offsets = [1, 0], sizes = [1, 128], strides = [1, 1]} : vector<2x128xf32> to vector<1x128xf32>
    %36 = vector.broadcast %34 : vector<32x1xf32> to vector<32x128xf32>
    %37 = vector.broadcast %35 : vector<1x128xf32> to vector<32x128xf32>
    %38 = arith.mulf %36, %37 : vector<32x128xf32>
    %39 = arith.addf %33, %38 : vector<32x128xf32>
    %c0_10 = arith.constant 0 : index
    %c0_11 = arith.constant 0 : index
    %40 = vector.load %arg9[%c0_10, %c0_11] : memref<32x1xf32, #tpu.memory_space<vmem>>, vector<32x1xf32>
    %41 = vector.broadcast %40 : vector<32x1xf32> to vector<32x128xf32>
    %42 = arith.addf %39, %41 : vector<32x128xf32>
    %43 = math.tanh %42 : vector<32x128xf32>
    %c0_12 = arith.constant 0 : index
    %c0_13 = arith.constant 0 : index
    %44 = vector.load %arg5[%c0_12, %c0_13] : memref<32x32xf32, #tpu.memory_space<vmem>>, vector<32x32xf32>
    %cst_14 = arith.constant dense<0.000000e+00> : vector<32x128xf32>
    %45 = tpu.matmul %44, %43, %cst_14 {dimension_numbers = #tpu.dot_dimension_numbers<[1], [0], [0], [1], [0, 0, 1, 1], [], []>} : vector<32x32xf32>, vector<32x128xf32>, vector<32x128xf32> -> vector<32x128xf32>
    %c0_15 = arith.constant 0 : index
    %c0_16 = arith.constant 0 : index
    %46 = vector.load %arg10[%c0_15, %c0_16] : memref<32x1xf32, #tpu.memory_space<vmem>>, vector<32x1xf32>
    %47 = vector.broadcast %46 : vector<32x1xf32> to vector<32x128xf32>
    %48 = arith.addf %45, %47 : vector<32x128xf32>
    %49 = math.tanh %48 : vector<32x128xf32>
    %c0_17 = arith.constant 0 : index
    %c0_18 = arith.constant 0 : index
    %50 = vector.load %arg6[%c0_17, %c0_18] : memref<32x32xf32, #tpu.memory_space<vmem>>, vector<32x32xf32>
    %cst_19 = arith.constant dense<0.000000e+00> : vector<32x128xf32>
    %51 = tpu.matmul %50, %49, %cst_19 {dimension_numbers = #tpu.dot_dimension_numbers<[1], [0], [0], [1], [0, 0, 1, 1], [], []>} : vector<32x32xf32>, vector<32x128xf32>, vector<32x128xf32> -> vector<32x128xf32>
    %c0_20 = arith.constant 0 : index
    %c0_21 = arith.constant 0 : index
    %52 = vector.load %arg11[%c0_20, %c0_21] : memref<32x1xf32, #tpu.memory_space<vmem>>, vector<32x1xf32>
    %53 = vector.broadcast %52 : vector<32x1xf32> to vector<32x128xf32>
    %54 = arith.addf %51, %53 : vector<32x128xf32>
    %55 = math.tanh %54 : vector<32x128xf32>
    %c0_22 = arith.constant 0 : index
    %c0_23 = arith.constant 0 : index
    %56 = vector.load %arg7[%c0_22, %c0_23] : memref<2x32xf32, #tpu.memory_space<vmem>>, vector<2x32xf32>
    %cst_24 = arith.constant dense<0.000000e+00> : vector<2x128xf32>
    %57 = tpu.matmul %56, %55, %cst_24 {dimension_numbers = #tpu.dot_dimension_numbers<[1], [0], [0], [1], [0, 0, 1, 1], [], []>} : vector<2x32xf32>, vector<32x128xf32>, vector<2x128xf32> -> vector<2x128xf32>
    %c0_25 = arith.constant 0 : index
    %c0_26 = arith.constant 0 : index
    %58 = vector.load %arg12[%c0_25, %c0_26] : memref<2x1xf32, #tpu.memory_space<vmem>>, vector<2x1xf32>
    %59 = vector.broadcast %58 : vector<2x1xf32> to vector<2x128xf32>
    %60 = arith.addf %57, %59 : vector<2x128xf32>
    %61 = math.tanh %60 : vector<2x128xf32>
    %62 = vector.broadcast %19 : vector<1x128xf32> to vector<2x128xf32>
    %63 = arith.mulf %62, %61 : vector<2x128xf32>
    %c0_27 = arith.constant 0 : index
    %c0_28 = arith.constant 0 : index
    %64 = vector.load %arg13[%c0_27, %c0_28] : memref<2x128xf32, #tpu.memory_space<vmem>>, vector<2x128xf32>
    tpu.vector_store %arg13[%c0_27, %c0_28], %63 {strides = array<i32>} : memref<2x128xf32, #tpu.memory_space<vmem>>, vector<2x128xf32>,
    return
  }
  func.func @transform_0(%arg0: i32) -> i32 {
    %c0_i32 = arith.constant 0 : i32
    %c0_i32_0 = arith.constant 0 : i32
    return %c0_i32 : i32
  }
  func.func @transform_1(%arg0: i32) -> (i32, i32) {
    %c0_i32 = arith.constant 0 : i32
    %c0_i32_0 = arith.constant 0 : i32
    return %c0_i32, %arg0 : i32, i32
  }
  func.func @transform_2(%arg0: i32) -> (i32, i32) {
    %c0_i32 = arith.constant 0 : i32
    %c0_i32_0 = arith.constant 0 : i32
    %c0_i32_1 = arith.constant 0 : i32
    return %c0_i32, %c0_i32_0 : i32, i32
  }
  func.func @transform_3(%arg0: i32) -> (i32, i32) {
    %c0_i32 = arith.constant 0 : i32
    %c0_i32_0 = arith.constant 0 : i32
    %c0_i32_1 = arith.constant 0 : i32
    return %c0_i32, %c0_i32_0 : i32, i32
  }
  func.func @transform_4(%arg0: i32) -> (i32, i32) {
    %c0_i32 = arith.constant 0 : i32
    %c0_i32_0 = arith.constant 0 : i32
    %c0_i32_1 = arith.constant 0 : i32
    return %c0_i32, %c0_i32_0 : i32, i32
  }
  func.func @transform_5(%arg0: i32) -> (i32, i32) {
    %c0_i32 = arith.constant 0 : i32
    %c0_i32_0 = arith.constant 0 : i32
    %c0_i32_1 = arith.constant 0 : i32
    return %c0_i32, %c0_i32_0 : i32, i32
  }
  func.func @transform_6(%arg0: i32) -> (i32, i32) {
    %c0_i32 = arith.constant 0 : i32
    %c0_i32_0 = arith.constant 0 : i32
    %c0_i32_1 = arith.constant 0 : i32
    return %c0_i32, %c0_i32_0 : i32, i32
  }
  func.func @transform_7(%arg0: i32) -> (i32, i32) {
    %c0_i32 = arith.constant 0 : i32
    %c0_i32_0 = arith.constant 0 : i32
    %c0_i32_1 = arith.constant 0 : i32
    return %c0_i32, %c0_i32_0 : i32, i32
  }
  func.func @transform_8(%arg0: i32) -> (i32, i32) {
    %c0_i32 = arith.constant 0 : i32
    %c0_i32_0 = arith.constant 0 : i32
    %c0_i32_1 = arith.constant 0 : i32
    return %c0_i32, %c0_i32_0 : i32, i32
  }
  func.func @transform_9(%arg0: i32) -> (i32, i32) {
    %c0_i32 = arith.constant 0 : i32
    %c0_i32_0 = arith.constant 0 : i32
    %c0_i32_1 = arith.constant 0 : i32
    return %c0_i32, %c0_i32_0 : i32, i32
  }
  func.func @transform_10(%arg0: i32) -> (i32, i32) {
    %c0_i32 = arith.constant 0 : i32
    %c0_i32_0 = arith.constant 0 : i32
    %c0_i32_1 = arith.constant 0 : i32
    return %c0_i32, %c0_i32_0 : i32, i32
  }
  func.func @transform_11(%arg0: i32) -> (i32, i32) {
    %c0_i32 = arith.constant 0 : i32
    %c0_i32_0 = arith.constant 0 : i32
    %c0_i32_1 = arith.constant 0 : i32
    return %c0_i32, %c0_i32_0 : i32, i32
  }
  func.func @transform_12(%arg0: i32) -> (i32, i32) {
    %c0_i32 = arith.constant 0 : i32
    %c0_i32_0 = arith.constant 0 : i32
    return %c0_i32, %arg0 : i32, i32
  }
}

</mosaic_0001>

<llo_original>
// kernel: tpu_custom_call.1
$region0: #{tpu_custom_call.1}
  #allocation0 [shape = 'u32[]', space=smem, size = 0x4, offset = 0x4, fixed_abs, tag = 'smem constant byte address 0x4 - core index']
  #allocation1 [shape = 'u32[72,128]{1,0:T(1,128)}', space=vmem, size = 0x9000, scoped, tag = 'internal scratch']
  %s0 = inlined_call_operand.vmem [shape: f32[3], index: 0, kind: input, shape index: {}]
  %s1 = inlined_call_operand.vmem [shape: f32[1,128], index: 1, kind: input, shape index: {}]
  %s2 = inlined_call_operand.vmem [shape: f32[2,1], index: 2, kind: input, shape index: {}]
  %s3 = inlined_call_operand.vmem [shape: f32[32,2], index: 3, kind: input, shape index: {}]
  %s4 = inlined_call_operand.vmem [shape: f32[32,32], index: 4, kind: input, shape index: {}]
  %s5 = inlined_call_operand.vmem [shape: f32[32,32], index: 5, kind: input, shape index: {}]
  %s6 = inlined_call_operand.vmem [shape: f32[2,32], index: 6, kind: input, shape index: {}]
  %s7 = inlined_call_operand.vmem [shape: f32[2,1], index: 7, kind: input, shape index: {}]
  %s8 = inlined_call_operand.vmem [shape: f32[32,1], index: 8, kind: input, shape index: {}]
  %s9 = inlined_call_operand.vmem [shape: f32[32,1], index: 9, kind: input, shape index: {}]
  %s10 = inlined_call_operand.vmem [shape: f32[32,1], index: 10, kind: input, shape index: {}]
  %s11 = inlined_call_operand.vmem [shape: f32[2,1], index: 11, kind: input, shape index: {}]
  %s12 = inlined_call_operand.hbm [shape: f32[2,128], index: 12, kind: output, shape index: {}]
  %s13 = sld [smem:[#allocation0]]
  $region62: #{tpu_custom_call.1} parent=0
    _
  %s15 = ssub.s32 1, %s13
  %s16 = scalar_select 0, %s15, %s13
  $region1: #{tpu_custom_call.1} parent=0
    #allocation2 [shape = 'u8[512]{0}', space=smem, size = 0x200, scoped, tag = 'input window, operand 0, single buffered']
    #allocation3 [shape = 's32[1]{0}', space=sflag, size = 0x4, scoped, tag = 'scoped memory for tpu_custom_call.1']
    #allocation4 [shape = 's32[1]{0}', space=sflag, size = 0x4, scoped, tag = 'scoped memory for tpu_custom_call.1']
    #allocation5 [shape = 'u8[1024]{0}', space=vmem, size = 0x400, scoped, tag = 'output window, operand 0, single buffered']
    %17 = vsyncpa [#allocation4], 0
    %18 = vsyncpa [#allocation3], 0
    // Predicated region
    $region2: #{tpu_custom_call.1} parent=1 // pred_check
      _
    $region3: #{tpu_custom_call.1} parent=1 // pred_check_branch
      %20 = sbr.rel (0) target = $region5
    $region4: #{tpu_custom_call.1} parent=1 // pred_region
      %22 = vsyncadd [#allocation4], 0
      %s24 = sshll.u32 %s0, 4
      %s25 = int_to_ptr.vmem [resolvable:$true] %s24
      %27 = dma.vmem_to_smem %s25, 16, [#allocation2], [#allocation4]
    $region5: #{tpu_custom_call.1} parent=1 // pred_fallthru
      _
    // Predicated region
    $region6: #{tpu_custom_call.1} parent=1 // pred_check
      _
    $region7: #{tpu_custom_call.1} parent=1 // pred_check_branch
      %29 = sbr.rel (0) target = $region9
    $region8: #{tpu_custom_call.1} parent=1 // pred_region
      _
    $region9: #{tpu_custom_call.1} parent=1 // pred_fallthru
      _
    // Predicated region
    $region10: #{tpu_custom_call.1} parent=1 // pred_check
      _
    $region11: #{tpu_custom_call.1} parent=1 // pred_check_branch
      %31 = sbr.rel (0) target = $region13
    $region12: #{tpu_custom_call.1} parent=1 // pred_region
      _
    $region13: #{tpu_custom_call.1} parent=1 // pred_fallthru
      _
    // Predicated region
    $region14: #{tpu_custom_call.1} parent=1 // pred_check
      _
    $region15: #{tpu_custom_call.1} parent=1 // pred_check_branch
      %33 = sbr.rel (0) target = $region17
    $region16: #{tpu_custom_call.1} parent=1 // pred_region
      _
    $region17: #{tpu_custom_call.1} parent=1 // pred_fallthru
      _
    // Predicated region
    $region18: #{tpu_custom_call.1} parent=1 // pred_check
      _
    $region19: #{tpu_custom_call.1} parent=1 // pred_check_branch
      %35 = sbr.rel (0) target = $region21
    $region20: #{tpu_custom_call.1} parent=1 // pred_region
      _
    $region21: #{tpu_custom_call.1} parent=1 // pred_fallthru
      _
    // Predicated region
    $region22: #{tpu_custom_call.1} parent=1 // pred_check
      _
    $region23: #{tpu_custom_call.1} parent=1 // pred_check_branch
      %37 = sbr.rel (0) target = $region25
    $region24: #{tpu_custom_call.1} parent=1 // pred_region
      _
    $region25: #{tpu_custom_call.1} parent=1 // pred_fallthru
      _
    // Predicated region
    $region26: #{tpu_custom_call.1} parent=1 // pred_check
      _
    $region27: #{tpu_custom_call.1} parent=1 // pred_check_branch
      %39 = sbr.rel (0) target = $region29
    $region28: #{tpu_custom_call.1} parent=1 // pred_region
      _
    $region29: #{tpu_custom_call.1} parent=1 // pred_fallthru
      _
    // Predicated region
    $region30: #{tpu_custom_call.1} parent=1 // pred_check
      _
    $region31: #{tpu_custom_call.1} parent=1 // pred_check_branch
      %41 = sbr.rel (0) target = $region33
    $region32: #{tpu_custom_call.1} parent=1 // pred_region
      _
    $region33: #{tpu_custom_call.1} parent=1 // pred_fallthru
      _
    // Predicated region
    $region34: #{tpu_custom_call.1} parent=1 // pred_check
      _
    $region35: #{tpu_custom_call.1} parent=1 // pred_check_branch
      %43 = sbr.rel (0) target = $region37
    $region36: #{tpu_custom_call.1} parent=1 // pred_region
      _
    $region37: #{tpu_custom_call.1} parent=1 // pred_fallthru
      _
    // Predicated region
    $region38: #{tpu_custom_call.1} parent=1 // pred_check
      _
    $region39: #{tpu_custom_call.1} parent=1 // pred_check_branch
      %45 = sbr.rel (0) target = $region41
    $region40: #{tpu_custom_call.1} parent=1 // pred_region
      _
    $region41: #{tpu_custom_call.1} parent=1 // pred_fallthru
      _
    // Predicated region
    $region42: #{tpu_custom_call.1} parent=1 // pred_check
      _
    $region43: #{tpu_custom_call.1} parent=1 // pred_check_branch
      %47 = sbr.rel (0) target = $region45
    $region44: #{tpu_custom_call.1} parent=1 // pred_region
      _
    $region45: #{tpu_custom_call.1} parent=1 // pred_fallthru
      _
    // Predicated region
    $region46: #{tpu_custom_call.1} parent=1 // pred_check
      _
    $region47: #{tpu_custom_call.1} parent=1 // pred_check_branch
      %49 = sbr.rel (0) target = $region49
    $region48: #{tpu_custom_call.1} parent=1 // pred_region
      _
    $region49: #{tpu_custom_call.1} parent=1 // pred_fallthru
      _
    // Predicated region
    $region50: #{tpu_custom_call.1} parent=1 // pred_check
      _
    $region51: #{tpu_custom_call.1} parent=1 // pred_check_branch
      %51 = sbr.rel (0) target = $region53
    $region52: #{tpu_custom_call.1} parent=1 // pred_region
      %53 = dma.done [#allocation4], 16
    $region53: #{tpu_custom_call.1} parent=1 // pred_fallthru
      _
    %54 = sfence
    %s55 = sld [smem:[#allocation2]]
    %s56 = sld [smem:[#allocation2 + $0x1]]
    %s57 = sld [smem:[#allocation2 + $0x2]]
    %v58 = vld [vmem:[%s1] sm:$0x1]
    %v59 = vmax.f32 %v58, 1e-06
    %v60 = vmin.f32 %v59, 0.999999
    %v61 = vsub.f32 1.0, %v60
    %v62 = vlog2.pop %v61
    %v63 = vmul.f32 %v62, 0.6931472
    %v64 = vstv %s55
    %v65 = vmul.f32 %v64, %v63
    %v66 = vlog2.pop %v60
    %v67 = vmul.f32 %v66, 0.6931472
    %v68 = vstv %s56
    %v69 = vmul.f32 %v68, %v67
    %v70 = vadd.f32 %v65, %v69
    %v71 = vmul.f32 %v70, 1.442695
    %v72 = vpow.pop %v71
    %v73 = vstv %s57
    %v74 = vmul.f32 %v73, %v72
    %v75 = vld [vmem:[%s2] sm:$0x3]
    %77 = vset.pattern.permute.xlu0 0
    %78 = vperm.xlu0 %77, %v75
    %v79 = vpop.permute.xlu0 %78
    %v82 = vperm.slane %v58, 0
    %v84 = vmul.f32 %v79, %v82
    %v85 = vld [vmem:[%s7] sm:$0x3]
    %87 = vset.pattern.permute.xlu0 0
    %88 = vperm.xlu0 %87, %v85
    %v89 = vpop.permute.xlu0 %88
    %v91 = vadd.f32 %v84, %v89
    %v92 = vtanh.pop %v91
    %v93 = vld [vmem:[%s3] sm:$0xff]
    %v94 = vld [vmem:[%s3 + $0x8] sm:$0xff]
    %v95 = vld [vmem:[%s3 + $0x10] sm:$0xff]
    %v96 = vld [vmem:[%s3 + $0x18] sm:$0xff]
    %98 = vset.pattern.permute.xlu0 0
    %99 = vperm.xlu0 %98, %v93
    %v100 = vpop.permute.xlu0 %99
    %103 = vset.pattern.permute.xlu0 0
    %104 = vperm.xlu0 %103, %v94
    %v105 = vpop.permute.xlu0 %104
    %108 = vset.pattern.permute.xlu0 0
    %109 = vperm.xlu0 %108, %v95
    %v110 = vpop.permute.xlu0 %109
    %113 = vset.pattern.permute.xlu0 0
    %114 = vperm.xlu0 %113, %v96
    %v115 = vpop.permute.xlu0 %114
    %v117 = vperm.slane %v92, 0
    %v118 = vmul.f32 %v100, %v117
    %v119 = vmul.f32 %v105, %v117
    %v120 = vmul.f32 %v110, %v117
    %v121 = vmul.f32 %v115, %v117
    %122 = vset.pattern.permute.xlu0 1
    %123 = vperm.xlu0 %122, %v93
    %v124 = vpop.permute.xlu0 %123
    %126 = vset.pattern.permute.xlu0 1
    %127 = vperm.xlu0 %126, %v94
    %v128 = vpop.permute.xlu0 %127
    %130 = vset.pattern.permute.xlu0 1
    %131 = vperm.xlu0 %130, %v95
    %v132 = vpop.permute.xlu0 %131
    %134 = vset.pattern.permute.xlu0 1
    %135 = vperm.xlu0 %134, %v96
    %v136 = vpop.permute.xlu0 %135
    %v138 = vperm.slane %v92, 1
    %v139 = vmul.f32 %v124, %v138
    %v140 = vmul.f32 %v128, %v138
    %v141 = vmul.f32 %v132, %v138
    %v142 = vmul.f32 %v136, %v138
    %v143 = vadd.f32 %v118, %v139
    %v144 = vadd.f32 %v119, %v140
    %v145 = vadd.f32 %v120, %v141
    %v146 = vadd.f32 %v121, %v142
    %v147 = vld [vmem:[%s8] sm:$0xff]
    %v148 = vld [vmem:[%s8 + $0x8] sm:$0xff]
    %v149 = vld [vmem:[%s8 + $0x10] sm:$0xff]
    %v150 = vld [vmem:[%s8 + $0x18] sm:$0xff]
    %152 = vset.pattern.permute.xlu0 0
    %153 = vperm.xlu0 %152, %v147
    %v154 = vpop.permute.xlu0 %153
    %157 = vset.pattern.permute.xlu0 0
    %158 = vperm.xlu0 %157, %v148
    %v159 = vpop.permute.xlu0 %158
    %162 = vset.pattern.permute.xlu0 0
    %163 = vperm.xlu0 %162, %v149
    %v164 = vpop.permute.xlu0 %163
    %167 = vset.pattern.permute.xlu0 0
    %168 = vperm.xlu0 %167, %v150
    %v169 = vpop.permute.xlu0 %168
    %v171 = vadd.f32 %v143, %v154
    %v172 = vadd.f32 %v144, %v159
    %v173 = vadd.f32 %v145, %v164
    %v174 = vadd.f32 %v146, %v169
    %v175 = vtanh.pop %v171
    %v176 = vtanh.pop %v172
    %v177 = vtanh.pop %v173
    %v178 = vtanh.pop %v174
    %v179 = vld [vmem:[%s4] sm:$0xff]
    %v180 = vld [vmem:[%s4 + $0x8] sm:$0xff]
    %v181 = vld [vmem:[%s4 + $0x10] sm:$0xff]
    %v182 = vld [vmem:[%s4 + $0x18] sm:$0xff]
    %v183 = vld [vmem:[%s9] sm:$0xff]
    %v184 = vld [vmem:[%s9 + $0x8] sm:$0xff]
    %v185 = vld [vmem:[%s9 + $0x10] sm:$0xff]
    %v186 = vld [vmem:[%s9 + $0x18] sm:$0xff]
    %188 = vset.pattern.permute.xlu0 0
    %189 = vperm.xlu0 %188, %v183
    %v190 = vpop.permute.xlu0 %189
    %193 = vset.pattern.permute.xlu0 0
    %194 = vperm.xlu0 %193, %v184
    %v195 = vpop.permute.xlu0 %194
    %198 = vset.pattern.permute.xlu0 0
    %199 = vperm.xlu0 %198, %v185
    %v200 = vpop.permute.xlu0 %199
    %203 = vset.pattern.permute.xlu0 0
    %204 = vperm.xlu0 %203, %v186
    %v205 = vpop.permute.xlu0 %204
    %vm207 = vcmask 261120
    %v209 = vsel %vm207, %v179, 0
    %v212 = vsel %vm207, %v180, 0
    %v215 = vsel %vm207, %v181, 0
    %v218 = vsel %vm207, %v182, 0
    %220 = vmatpush.msra.mxu0 0.0
    %221 = vmatpush.msra.mxu0 0.0
    %222 = vmatpush.msra.mxu0 0.0
    %223 = vmatpush.msra.mxu0 0.0
    %224 = vmatpush.msra.mxu0 0.0
    %225 = vmatpush.msra.mxu0 0.0
    %226 = vmatpush.msra.mxu0 0.0
    %227 = vmatpush.msra.mxu0 0.0
    %228 = vmatpush.msra.mxu0 0.0
    %229 = vmatpush.msra.mxu0 0.0
    %230 = vmatpush.msra.mxu0 0.0
    %231 = vmatpush.msra.mxu0 0.0
    %232 = vmatpush.msra.mxu0 %v178
    %233 = vmatpush.msra.mxu0 %v177
    %234 = vmatpush.msra.mxu0 %v176
    %235 = vmatpush.msra.mxu0 %v175
    %236 = vmatmul.f32.gmra.mxu0 %v209
    %v237 = vpop.f32.mrf.mxu0
    %v238 = vadd.f32 %v190, %v237
    %239 = vmatmul.f32.gmra.mxu0 %v212
    %v240 = vpop.f32.mrf.mxu0
    %v241 = vadd.f32 %v195, %v240
    %242 = vmatmul.f32.gmra.mxu0 %v215
    %v243 = vpop.f32.mrf.mxu0
    %v244 = vadd.f32 %v200, %v243
    %245 = vmatmul.f32.gmra.mxu0 %v218
    %v246 = vpop.f32.mrf.mxu0
    %v247 = vadd.f32 %v205, %v246
    %248 = vdwg.mxu0
    %v249 = vtanh.pop %v238
    %v250 = vtanh.pop %v241
    %v251 = vtanh.pop %v244
    %v252 = vtanh.pop %v247
    %v253 = vld [vmem:[%s5] sm:$0xff]
    %v254 = vld [vmem:[%s5 + $0x8] sm:$0xff]
    %v255 = vld [vmem:[%s5 + $0x10] sm:$0xff]
    %v256 = vld [vmem:[%s5 + $0x18] sm:$0xff]
    %v257 = vld [vmem:[%s10] sm:$0xff]
    %v258 = vld [vmem:[%s10 + $0x8] sm:$0xff]
    %v259 = vld [vmem:[%s10 + $0x10] sm:$0xff]
    %v260 = vld [vmem:[%s10 + $0x18] sm:$0xff]
    %262 = vset.pattern.permute.xlu0 0
    %263 = vperm.xlu0 %262, %v257
    %v264 = vpop.permute.xlu0 %263
    %267 = vset.pattern.permute.xlu0 0
    %268 = vperm.xlu0 %267, %v258
    %v269 = vpop.permute.xlu0 %268
    %272 = vset.pattern.permute.xlu0 0
    %273 = vperm.xlu0 %272, %v259
    %v274 = vpop.permute.xlu0 %273
    %277 = vset.pattern.permute.xlu0 0
    %278 = vperm.xlu0 %277, %v260
    %v279 = vpop.permute.xlu0 %278
    %v282 = vsel %vm207, %v253, 0
    %v285 = vsel %vm207, %v254, 0
    %v288 = vsel %vm207, %v255, 0
    %v291 = vsel %vm207, %v256, 0
    %293 = vmatpush.msra.mxu0 0.0
    %294 = vmatpush.msra.mxu0 0.0
    %295 = vmatpush.msra.mxu0 0.0
    %296 = vmatpush.msra.mxu0 0.0
    %297 = vmatpush.msra.mxu0 0.0
    %298 = vmatpush.msra.mxu0 0.0
    %299 = vmatpush.msra.mxu0 0.0
    %300 = vmatpush.msra.mxu0 0.0
    %301 = vmatpush.msra.mxu0 0.0
    %302 = vmatpush.msra.mxu0 0.0
    %303 = vmatpush.msra.mxu0 0.0
    %304 = vmatpush.msra.mxu0 0.0
    %305 = vmatpush.msra.mxu0 %v252
    %306 = vmatpush.msra.mxu0 %v251
    %307 = vmatpush.msra.mxu0 %v250
    %308 = vmatpush.msra.mxu0 %v249
    %309 = vmatmul.f32.gmra.mxu0 %v282
    %v310 = vpop.f32.mrf.mxu0
    %v311 = vadd.f32 %v264, %v310
    %312 = vmatmul.f32.gmra.mxu0 %v285
    %v313 = vpop.f32.mrf.mxu0
    %v314 = vadd.f32 %v269, %v313
    %315 = vmatmul.f32.gmra.mxu0 %v288
    %v316 = vpop.f32.mrf.mxu0
    %v317 = vadd.f32 %v274, %v316
    %318 = vmatmul.f32.gmra.mxu0 %v291
    %v319 = vpop.f32.mrf.mxu0
    %v320 = vadd.f32 %v279, %v319
    %321 = vdwg.mxu0
    %v322 = vtanh.pop %v311
    %v323 = vtanh.pop %v314
    %v324 = vtanh.pop %v317
    %v325 = vtanh.pop %v320
    %v326 = vld [vmem:[%s6] sm:$0x3]
    %v327 = vld [vmem:[%s11] sm:$0x3]
    %329 = vset.pattern.permute.xlu0 0
    %330 = vperm.xlu0 %329, %v327
    %v331 = vpop.permute.xlu0 %330
    %v334 = vsel %vm207, %v326, 0
    %336 = vmatpush.msra.mxu0 0.0
    %337 = vmatpush.msra.mxu0 0.0
    %338 = vmatpush.msra.mxu0 0.0
    %339 = vmatpush.msra.mxu0 0.0
    %340 = vmatpush.msra.mxu0 0.0
    %341 = vmatpush.msra.mxu0 0.0
    %342 = vmatpush.msra.mxu0 0.0
    %343 = vmatpush.msra.mxu0 0.0
    %344 = vmatpush.msra.mxu0 0.0
    %345 = vmatpush.msra.mxu0 0.0
    %346 = vmatpush.msra.mxu0 0.0
    %347 = vmatpush.msra.mxu0 0.0
    %348 = vmatpush.msra.mxu0 %v325
    %349 = vmatpush.msra.mxu0 %v324
    %350 = vmatpush.msra.mxu0 %v323
    %351 = vmatpush.msra.mxu0 %v322
    %352 = vmatmul.f32.gmra.mxu0 %v334
    %v353 = vpop.f32.mrf.mxu0
    %v354 = vadd.f32 %v331, %v353
    %355 = vdwg.mxu0
    %v356 = vtanh.pop %v354
    %v358 = vperm.slane %v74, 0
    %v360 = vmul.f32 %v358, %v356
    %361 = vst [vmem:[#allocation5] sm:$0x3] %v360
    // Predicated region
    $region54: #{tpu_custom_call.1} parent=1 // pred_check
      _
    $region55: #{tpu_custom_call.1} parent=1 // pred_check_branch
      %363 = sbr.rel (0) target = $region57
    $region56: #{tpu_custom_call.1} parent=1 // pred_region
      %365 = vsyncadd [#allocation3], 0
      %s367 = sshll.u32 [#allocation5], 4
      %s368 = int_to_ptr.vmem [resolvable:$true] %s367
      %s369 = sshll.u32 %s12, 4
      %s370 = int_to_ptr.hbm [resolvable:$true] %s369
      %372 = dma.vmem_to_hbm [thread:$0]  %s368, 32, %s370, [#allocation3]
    $region57: #{tpu_custom_call.1} parent=1 // pred_fallthru
      _
    // Predicated region
    $region58: #{tpu_custom_call.1} parent=1 // pred_check
      _
    $region59: #{tpu_custom_call.1} parent=1 // pred_check_branch
      %374 = sbr.rel (0) target = $region61
    $region60: #{tpu_custom_call.1} parent=1 // pred_region
      %376 = dma.done [#allocation3], 32
    $region61: #{tpu_custom_call.1} parent=1 // pred_fallthru
      _
    %377 = vsyncpa [#allocation3], 1
    %378 = vsyncpa [#allocation4], 1

</llo_original>
